<compile_context>
chip_gen: v6e
topology: v6e:2x2x1
jax: 0.10.0
libtpu: 0.0.40
codegen_flags: <defaults>
</compile_context>

<pallas_src>
import functools

import jax
import jax.numpy as jnp
from jax import lax
from jax.experimental import pallas as pl
from jax.experimental.pallas import tpu as pltpu


def _round_up(n, m):
    return ((n + m - 1) // m) * m


# NT dimension numbers: contract both operands on their last dim
# (lhs (H, K) . rhs (TB, K) -> (H, TB)); same pattern the official flash
# attention TPU kernel uses for q @ k^T, so it lowers natively to the MXU.
_NT_DIMS = (((1,), (1,)), ((), ()))


def _mlp_kernel(x_ref, w1_ref, b1_ref, w2_ref, b2_ref, w3_ref, b3_ref, o_ref,
                *, sub_b, matmul_dtype):
    # x_ref:  (tb, in_dim)  row-major batch block (contiguous HBM DMA)
    # w1_ref: (H, in_dim)   b1_ref: (H, 1)
    # w2_ref: (H, H)        b2_ref: (H, 1)
    # w3_ref: (H, 1)        b3_ref: (1, 1)
    # o_ref:  (1, tb)       lane-dense output tile (batch on lanes)
    tb, _ = x_ref.shape
    n_sub = tb // sub_b

    # Resident params: load once per tile, reused across sub-blocks.
    w1 = w1_ref[...]
    b1 = b1_ref[...]
    w2 = w2_ref[...].astype(matmul_dtype)
    b2 = b2_ref[...]
    w3 = w3_ref[...]
    b3 = b3_ref[...]

    # Static sub-block loop: lets the scheduler overlap MXU (layers 1/2) with
    # VPU/XLU (bias+ReLU, layer-3 reduce) across sub-blocks and caps the
    # h1/h2 live ranges at (H, sub_b) = 32 vregs each.
    for j in range(n_sub):
        cols = pl.ds(j * sub_b, sub_b)                 # static slice -> free
        xs = x_ref[cols, :]                            # (sub_b, in_dim)

        # Layer 1: Linear(in_dim -> H) via NT dot_general on the MXU.  K=3 is
        # poor MXU utilization, but the MXU is otherwise idle here and this
        # puts the batch axis on lanes with no explicit transpose.
        h1 = lax.dot_general(w1, xs, _NT_DIMS,
                             preferred_element_type=jnp.float32) + b1
        h1 = jnp.maximum(h1, 0.0)                      # (H, sub_b)

        # Layer 2: Linear(H -> H) + ReLU — the main 64x64 MXU matmul.
        h2 = jnp.dot(w2, h1.astype(matmul_dtype),
                     preferred_element_type=jnp.float32) + b2
        h2 = jnp.maximum(h2, 0.0)                      # (H, sub_b)

        # Layer 3: Linear(H -> 1) as multiply + sublane reduce (VPU/XLU),
        # keeping the tiny-N matmul off the MXU's critical result path.
        out = jnp.sum(w3 * h2, axis=0, keepdims=True) + b3   # (1, sub_b)

        o_ref[:, cols] = out.astype(o_ref.dtype)


def mlp_forward(x, params, *, block_b=4096, matmul_dtype=jnp.float32):
    """x: (B, in_dim) f32.  params: PyTorch-layout weights (out, in), biases (out,)."""
    B, in_dim = x.shape
    H = params["w1"].shape[0]
    out_dim = params["w3"].shape[0]
    assert out_dim == 1, "layer-3 reduce path assumes output_dim == 1"

    # Batch tile: large (amortize per-grid-step overhead) but capped at
    # ceil(B/2) so the parallel grid keeps >=2 steps for v7x's two TCs.
    block_b = _round_up(block_b, 128)
    tb = max(128, min(block_b, _round_up(-(-B // 2), 128)))
    # In-kernel sub-block width (must divide tb; tb is a multiple of 128).
    sub_b = next(s for s in (512, 256, 128) if tb % s == 0)
    grid = (pl.cdiv(B, tb),)        # ragged last tile handled by masked writeback

    w1 = params["w1"]                                 # (H, in_dim)
    b1 = params["b1"].reshape(H, 1)
    w2 = params["w2"]                                 # (H, H)
    b2 = params["b2"].reshape(H, 1)
    w3t = params["w3"].T                              # (H, 1)
    b3 = params["b3"].reshape(out_dim, 1)

    resident = lambda a: pl.BlockSpec(a.shape, lambda i: (0, 0))

    param_bytes = int(sum(p.size * p.dtype.itemsize
                          for p in (w1, b1, w2, b2, w3t, b3)))
    cost = pl.CostEstimate(
        flops=2 * B * (in_dim * H + H * H + H * out_dim),
        transcendentals=0,
        bytes_accessed=B * (in_dim + out_dim) * x.dtype.itemsize + param_bytes,
    )

    out_t = pl.pallas_call(
        functools.partial(_mlp_kernel, sub_b=sub_b, matmul_dtype=matmul_dtype),
        out_shape=jax.ShapeDtypeStruct((out_dim, B), x.dtype),
        grid_spec=pltpu.PrefetchScalarGridSpec(
            num_scalar_prefetch=0,
            grid=grid,
            in_specs=[
                pl.BlockSpec((tb, in_dim), lambda i: (i, 0)),  # contiguous x tile
                resident(w1), resident(b1),
                resident(w2), resident(b2),
                resident(w3t), resident(b3),
            ],
            out_specs=pl.BlockSpec((out_dim, tb), lambda i: (0, i)),
        ),
        compiler_params=pltpu.CompilerParams(
            dimension_semantics=("parallel",)),       # both TCs on v7x
        cost_estimate=cost,
    )(x, w1, b1, w2, b2, w3t, b3)

    # (1, B) -> (B, 1): bitcast-equivalent transpose, free in XLA.
    return out_t.T


def init_params(key, input_dim=3, hidden_dim=64, output_dim=1):
    """PyTorch-style nn.Linear init: U(-1/sqrt(fan_in), 1/sqrt(fan_in)), W (out, in)."""
    ks = jax.random.split(key, 6)

    def linear(kw, kb, fan_in, fan_out):
        bound = 1.0 / jnp.sqrt(jnp.float32(fan_in))
        w = jax.random.uniform(kw, (fan_out, fan_in), jnp.float32, -bound, bound)
        b = jax.random.uniform(kb, (fan_out,), jnp.float32, -bound, bound)
        return w, b

    w1, b1 = linear(ks[0], ks[1], input_dim, hidden_dim)
    w2, b2 = linear(ks[2], ks[3], hidden_dim, hidden_dim)
    w3, b3 = linear(ks[4], ks[5], hidden_dim, output_dim)
    return {"w1": w1, "b1": b1, "w2": w2, "b2": b2, "w3": w3, "b3": b3}


def mlp_reference(x, p):
    h1 = jnp.maximum(x @ p["w1"].T + p["b1"], 0.0)
    h2 = jnp.maximum(h1 @ p["w2"].T + p["b2"], 0.0)
    return h2 @ p["w3"].T + p["b3"]


if __name__ == "__main__":
    key = jax.random.PRNGKey(0)
    k_param, k_x1, k_x2 = jax.random.split(key, 3)

    INPUT_DIM, HIDDEN_DIM, OUTPUT_DIM = 3, 64, 1
    params = init_params(k_param, INPUT_DIM, HIDDEN_DIM, OUTPUT_DIM)

    # Small-shape check: B=8 -> one ragged 128-wide tile, grid=(1,), 1 sub-block.
    B = 8
    x = jax.random.normal(k_x1, (B, INPUT_DIM), jnp.float32)
    out = jax.block_until_ready(mlp_forward(x, params))
    ref = mlp_reference(x, params)
    assert out.shape == (B, OUTPUT_DIM), out.shape
    # Tolerance slightly looser than f32 eps: MXU dots + XLU sublane reduce
    # reassociate sums relative to the XLA matmul reference.  (bf16
    # matmul_dtype would need a much looser tolerance; default stays f32.)
    assert jnp.allclose(out, ref, atol=1e-4, rtol=1e-4), (
        f"max err {jnp.max(jnp.abs(out - ref))}")

    # Larger check: 2 grid steps (parallel axis), tb=2560 -> 5 sub-blocks per
    # tile, ragged last tile (5000 % 2560 != 0) exercising masked writeback.
    B2 = 5000
    x2 = jax.random.normal(k_x2, (B2, INPUT_DIM), jnp.float32)
    out2 = jax.block_until_ready(mlp_forward(x2, params))
    ref2 = mlp_reference(x2, params)
    assert out2.shape == (B2, OUTPUT_DIM), out2.shape
    assert jnp.allclose(out2, ref2, atol=1e-4, rtol=1e-4), (
        f"max err {jnp.max(jnp.abs(out2 - ref2))}")

    print("KERNEL_OK")
</pallas_src>

<mosaic_0001>
module attributes {stable_mosaic.version = 11 : i64} {
  func.func @_mlp_kernel(%arg0: i32, %arg1: memref<128x3xf32, #tpu.memory_space<vmem>>, %arg2: memref<64x3xf32, #tpu.memory_space<vmem>>, %arg3: memref<64x1xf32, #tpu.memory_space<vmem>>, %arg4: memref<64x64xf32, #tpu.memory_space<vmem>>, %arg5: memref<64x1xf32, #tpu.memory_space<vmem>>, %arg6: memref<64x1xf32, #tpu.memory_space<vmem>>, %arg7: memref<1x1xf32, #tpu.memory_space<vmem>>, %arg8: memref<1x128xf32, #tpu.memory_space<vmem>>) attributes {dimension_semantics = [#tpu.dimension_semantics<parallel>], iteration_bounds = array<i64: 1>, scalar_prefetch = 0 : i64, scratch_operands = 0 : i64, tpu.core_type = #tpu.core_type<tc>, window_params = [{transform_indices = @transform_0, window_bounds = array<i64: 128, 3>}, {pipeline_mode = #tpu.pipeline_mode<synchronous>, transform_indices = @transform_1, window_bounds = array<i64: 64, 3>}, {pipeline_mode = #tpu.pipeline_mode<synchronous>, transform_indices = @transform_2, window_bounds = array<i64: 64, 1>}, {pipeline_mode = #tpu.pipeline_mode<synchronous>, transform_indices = @transform_3, window_bounds = array<i64: 64, 64>}, {pipeline_mode = #tpu.pipeline_mode<synchronous>, transform_indices = @transform_4, window_bounds = array<i64: 64, 1>}, {pipeline_mode = #tpu.pipeline_mode<synchronous>, transform_indices = @transform_5, window_bounds = array<i64: 64, 1>}, {pipeline_mode = #tpu.pipeline_mode<synchronous>, transform_indices = @transform_6, window_bounds = array<i64: 1, 1>}, {transform_indices = @transform_7, window_bounds = array<i64: 1, 128>}]} {
    %c0 = arith.constant 0 : index
    %c0_0 = arith.constant 0 : index
    %0 = vector.load %arg2[%c0, %c0_0] : memref<64x3xf32, #tpu.memory_space<vmem>>, vector<64x3xf32>
    %c0_1 = arith.constant 0 : index
    %c0_2 = arith.constant 0 : index
    %1 = vector.load %arg3[%c0_1, %c0_2] : memref<64x1xf32, #tpu.memory_space<vmem>>, vector<64x1xf32>
    %c0_3 = arith.constant 0 : index
    %c0_4 = arith.constant 0 : index
    %2 = vector.load %arg4[%c0_3, %c0_4] : memref<64x64xf32, #tpu.memory_space<vmem>>, vector<64x64xf32>
    %c0_5 = arith.constant 0 : index
    %c0_6 = arith.constant 0 : index
    %3 = vector.load %arg5[%c0_5, %c0_6] : memref<64x1xf32, #tpu.memory_space<vmem>>, vector<64x1xf32>
    %c0_7 = arith.constant 0 : index
    %c0_8 = arith.constant 0 : index
    %4 = vector.load %arg6[%c0_7, %c0_8] : memref<64x1xf32, #tpu.memory_space<vmem>>, vector<64x1xf32>
    %c0_9 = arith.constant 0 : index
    %c0_10 = arith.constant 0 : index
    %5 = vector.load %arg7[%c0_9, %c0_10] : memref<1x1xf32, #tpu.memory_space<vmem>>, vector<1x1xf32>
    %c0_11 = arith.constant 0 : index
    %c0_12 = arith.constant 0 : index
    %6 = vector.load %arg1[%c0_11, %c0_12] : memref<128x3xf32, #tpu.memory_space<vmem>>, vector<128x3xf32>
    %cst = arith.constant dense<0.000000e+00> : vector<64x128xf32>
    %7 = tpu.matmul %0, %6, %cst {dimension_numbers = #tpu.dot_dimension_numbers<[1], [1], [0], [0], [0, 0, 1, 0], [], []>} : vector<64x3xf32>, vector<128x3xf32>, vector<64x128xf32> -> vector<64x128xf32>
    %8 = vector.broadcast %1 : vector<64x1xf32> to vector<64x128xf32>
    %9 = arith.addf %7, %8 : vector<64x128xf32>
    %cst_13 = arith.constant 0.000000e+00 : f32
    %10 = vector.broadcast %cst_13 : f32 to vector<64x128xf32>
    %11 = arith.maximumf %9, %10 : vector<64x128xf32>
    %cst_14 = arith.constant dense<0.000000e+00> : vector<64x128xf32>
    %12 = tpu.matmul %2, %11, %cst_14 {dimension_numbers = #tpu.dot_dimension_numbers<[1], [0], [0], [1], [0, 0, 1, 1], [], []>} : vector<64x64xf32>, vector<64x128xf32>, vector<64x128xf32> -> vector<64x128xf32>
    %13 = vector.broadcast %3 : vector<64x1xf32> to vector<64x128xf32>
    %14 = arith.addf %12, %13 : vector<64x128xf32>
    %cst_15 = arith.constant 0.000000e+00 : f32
    %15 = vector.broadcast %cst_15 : f32 to vector<64x128xf32>
    %16 = arith.maximumf %14, %15 : vector<64x128xf32>
    %17 = vector.broadcast %4 : vector<64x1xf32> to vector<64x128xf32>
    %18 = arith.mulf %17, %16 : vector<64x128xf32>
    %cst_16 = arith.constant dense<0.000000e+00> : vector<128xf32>
    %19 = vector.multi_reduction <add>, %18, %cst_16 [0] : vector<64x128xf32> to vector<128xf32>
    %20 = vector.shape_cast %19 : vector<128xf32> to vector<1x128xf32>
    %21 = vector.broadcast %5 : vector<1x1xf32> to vector<1x128xf32>
    %22 = arith.addf %20, %21 : vector<1x128xf32>
    %c0_17 = arith.constant 0 : index
    %c0_18 = arith.constant 0 : index
    %23 = vector.load %arg8[%c0_17, %c0_18] : memref<1x128xf32, #tpu.memory_space<vmem>>, vector<1x128xf32>
    tpu.vector_store %arg8[%c0_17, %c0_18], %22 {strides = array<i32>} : memref<1x128xf32, #tpu.memory_space<vmem>>, vector<1x128xf32>,
    return
  }
  func.func @transform_0(%arg0: i32) -> (i32, i32) {
    %c0_i32 = arith.constant 0 : i32
    %c0_i32_0 = arith.constant 0 : i32
    return %arg0, %c0_i32 : i32, i32
  }
  func.func @transform_1(%arg0: i32) -> (i32, i32) {
    %c0_i32 = arith.constant 0 : i32
    %c0_i32_0 = arith.constant 0 : i32
    %c0_i32_1 = arith.constant 0 : i32
    return %c0_i32, %c0_i32_0 : i32, i32
  }
  func.func @transform_2(%arg0: i32) -> (i32, i32) {
    %c0_i32 = arith.constant 0 : i32
    %c0_i32_0 = arith.constant 0 : i32
    %c0_i32_1 = arith.constant 0 : i32
    return %c0_i32, %c0_i32_0 : i32, i32
  }
  func.func @transform_3(%arg0: i32) -> (i32, i32) {
    %c0_i32 = arith.constant 0 : i32
    %c0_i32_0 = arith.constant 0 : i32
    %c0_i32_1 = arith.constant 0 : i32
    return %c0_i32, %c0_i32_0 : i32, i32
  }
  func.func @transform_4(%arg0: i32) -> (i32, i32) {
    %c0_i32 = arith.constant 0 : i32
    %c0_i32_0 = arith.constant 0 : i32
    %c0_i32_1 = arith.constant 0 : i32
    return %c0_i32, %c0_i32_0 : i32, i32
  }
  func.func @transform_5(%arg0: i32) -> (i32, i32) {
    %c0_i32 = arith.constant 0 : i32
    %c0_i32_0 = arith.constant 0 : i32
    %c0_i32_1 = arith.constant 0 : i32
    return %c0_i32, %c0_i32_0 : i32, i32
  }
  func.func @transform_6(%arg0: i32) -> (i32, i32) {
    %c0_i32 = arith.constant 0 : i32
    %c0_i32_0 = arith.constant 0 : i32
    %c0_i32_1 = arith.constant 0 : i32
    return %c0_i32, %c0_i32_0 : i32, i32
  }
  func.func @transform_7(%arg0: i32) -> (i32, i32) {
    %c0_i32 = arith.constant 0 : i32
    %c0_i32_0 = arith.constant 0 : i32
    return %c0_i32, %arg0 : i32, i32
  }
}

</mosaic_0001>

<llo_original>
// kernel: tpu_custom_call.1
$region0: #{tpu_custom_call.1}
  #allocation0 [shape = 'u32[]', space=smem, size = 0x4, offset = 0x4, fixed_abs, tag = 'smem constant byte address 0x4 - core index']
  #allocation1 [shape = 'u32[144,128]{1,0:T(1,128)}', space=vmem, size = 0x12000, scoped, tag = 'internal scratch']
  #allocation2 [shape = 'f32[1,1]{1,0:T(1,128)S(1)}', space=vmem, size = 0x200, scoped, tag = 'scoped memory for tpu_custom_call.1']
  %s0 = inlined_call_operand.vmem [shape: f32[8,3], index: 0, kind: input, shape index: {}]
  %s1 = inlined_call_operand.vmem [shape: f32[64,3], index: 1, kind: input, shape index: {}]
  %s2 = inlined_call_operand.vmem [shape: f32[64,1], index: 2, kind: input, shape index: {}]
  %s3 = inlined_call_operand.vmem [shape: f32[64,64], index: 3, kind: input, shape index: {}]
  %s4 = inlined_call_operand.vmem [shape: f32[64,1], index: 4, kind: input, shape index: {}]
  %s5 = inlined_call_operand.vmem [shape: f32[64,1], index: 5, kind: input, shape index: {}]
  %s6 = inlined_call_operand.<no memory space> [shape: f32[1,1], index: 6, kind: input, shape index: {}]
  %s7 = inlined_call_operand.hbm [shape: f32[1,8], index: 7, kind: output, shape index: {}]
  %s8 = sld [smem:[#allocation0]]
  $region38: #{tpu_custom_call.1} parent=0
    _
  %s10 = ssub.s32 1, %s8
  %s11 = scalar_select 0, %s10, %s8
  %v12 = vstv %s6
  %13 = vst [vmem:[#allocation2] sm:$0x1] %v12
  $region1: #{tpu_custom_call.1} parent=0
    #allocation3 [shape = 'u8[512]{0}', space=vmem, size = 0x400, scoped, tag = 'output window, operand 0, single buffered']
    #allocation4 [shape = 's32[1]{0}', space=sflag, size = 0x4, scoped, tag = 'scoped memory for tpu_custom_call.1']
    %14 = vsyncpa [#allocation4], 0
    // Predicated region
    $region2: #{tpu_custom_call.1} parent=1 // pred_check
      _
    $region3: #{tpu_custom_call.1} parent=1 // pred_check_branch
      %16 = sbr.rel (0) target = $region5
    $region4: #{tpu_custom_call.1} parent=1 // pred_region
      _
    $region5: #{tpu_custom_call.1} parent=1 // pred_fallthru
      _
    // Predicated region
    $region6: #{tpu_custom_call.1} parent=1 // pred_check
      _
    $region7: #{tpu_custom_call.1} parent=1 // pred_check_branch
      %18 = sbr.rel (0) target = $region9
    $region8: #{tpu_custom_call.1} parent=1 // pred_region
      _
    $region9: #{tpu_custom_call.1} parent=1 // pred_fallthru
      _
    // Predicated region
    $region10: #{tpu_custom_call.1} parent=1 // pred_check
      _
    $region11: #{tpu_custom_call.1} parent=1 // pred_check_branch
      %20 = sbr.rel (0) target = $region13
    $region12: #{tpu_custom_call.1} parent=1 // pred_region
      _
    $region13: #{tpu_custom_call.1} parent=1 // pred_fallthru
      _
    // Predicated region
    $region14: #{tpu_custom_call.1} parent=1 // pred_check
      _
    $region15: #{tpu_custom_call.1} parent=1 // pred_check_branch
      %22 = sbr.rel (0) target = $region17
    $region16: #{tpu_custom_call.1} parent=1 // pred_region
      _
    $region17: #{tpu_custom_call.1} parent=1 // pred_fallthru
      _
    // Predicated region
    $region18: #{tpu_custom_call.1} parent=1 // pred_check
      _
    $region19: #{tpu_custom_call.1} parent=1 // pred_check_branch
      %24 = sbr.rel (0) target = $region21
    $region20: #{tpu_custom_call.1} parent=1 // pred_region
      _
    $region21: #{tpu_custom_call.1} parent=1 // pred_fallthru
      _
    // Predicated region
    $region22: #{tpu_custom_call.1} parent=1 // pred_check
      _
    $region23: #{tpu_custom_call.1} parent=1 // pred_check_branch
      %26 = sbr.rel (0) target = $region25
    $region24: #{tpu_custom_call.1} parent=1 // pred_region
      _
    $region25: #{tpu_custom_call.1} parent=1 // pred_fallthru
      _
    // Predicated region
    $region26: #{tpu_custom_call.1} parent=1 // pred_check
      _
    $region27: #{tpu_custom_call.1} parent=1 // pred_check_branch
      %28 = sbr.rel (0) target = $region29
    $region28: #{tpu_custom_call.1} parent=1 // pred_region
      _
    $region29: #{tpu_custom_call.1} parent=1 // pred_fallthru
      _
    %v29 = vld [vmem:[%s1] sm:$0xff]
    %v30 = vld [vmem:[%s1 + $0x8] sm:$0xff]
    %v31 = vld [vmem:[%s1 + $0x10] sm:$0xff]
    %v32 = vld [vmem:[%s1 + $0x18] sm:$0xff]
    %v33 = vld [vmem:[%s1 + $0x20] sm:$0xff]
    %v34 = vld [vmem:[%s1 + $0x28] sm:$0xff]
    %v35 = vld [vmem:[%s1 + $0x30] sm:$0xff]
    %v36 = vld [vmem:[%s1 + $0x38] sm:$0xff]
    %v37 = vld [vmem:[%s2] sm:$0xff]
    %v38 = vld [vmem:[%s2 + $0x8] sm:$0xff]
    %v39 = vld [vmem:[%s2 + $0x10] sm:$0xff]
    %v40 = vld [vmem:[%s2 + $0x18] sm:$0xff]
    %v41 = vld [vmem:[%s2 + $0x20] sm:$0xff]
    %v42 = vld [vmem:[%s2 + $0x28] sm:$0xff]
    %v43 = vld [vmem:[%s2 + $0x30] sm:$0xff]
    %v44 = vld [vmem:[%s2 + $0x38] sm:$0xff]
    %v45 = vld [vmem:[%s3] sm:$0xff]
    %v46 = vld [vmem:[%s3 + $0x8] sm:$0xff]
    %v47 = vld [vmem:[%s3 + $0x10] sm:$0xff]
    %v48 = vld [vmem:[%s3 + $0x18] sm:$0xff]
    %v49 = vld [vmem:[%s3 + $0x20] sm:$0xff]
    %v50 = vld [vmem:[%s3 + $0x28] sm:$0xff]
    %v51 = vld [vmem:[%s3 + $0x30] sm:$0xff]
    %v52 = vld [vmem:[%s3 + $0x38] sm:$0xff]
    %v53 = vld [vmem:[%s4] sm:$0xff]
    %v54 = vld [vmem:[%s4 + $0x8] sm:$0xff]
    %v55 = vld [vmem:[%s4 + $0x10] sm:$0xff]
    %v56 = vld [vmem:[%s4 + $0x18] sm:$0xff]
    %v57 = vld [vmem:[%s4 + $0x20] sm:$0xff]
    %v58 = vld [vmem:[%s4 + $0x28] sm:$0xff]
    %v59 = vld [vmem:[%s4 + $0x30] sm:$0xff]
    %v60 = vld [vmem:[%s4 + $0x38] sm:$0xff]
    %v61 = vld [vmem:[%s5] sm:$0xff]
    %v62 = vld [vmem:[%s5 + $0x8] sm:$0xff]
    %v63 = vld [vmem:[%s5 + $0x10] sm:$0xff]
    %v64 = vld [vmem:[%s5 + $0x18] sm:$0xff]
    %v65 = vld [vmem:[%s5 + $0x20] sm:$0xff]
    %v66 = vld [vmem:[%s5 + $0x28] sm:$0xff]
    %v67 = vld [vmem:[%s5 + $0x30] sm:$0xff]
    %v68 = vld [vmem:[%s5 + $0x38] sm:$0xff]
    %v69 = vld [vmem:[#allocation2] sm:$0x1]
    %v70 = vld [vmem:[%s0] sm:$0xff]
    %v71 = vld [vmem:[%s0 + $0x8] sm:$0xff]
    %v72 = vld [vmem:[%s0 + $0x10] sm:$0xff]
    %v73 = vld [vmem:[%s0 + $0x18] sm:$0xff]
    %v74 = vld [vmem:[%s0 + $0x20] sm:$0xff]
    %v75 = vld [vmem:[%s0 + $0x28] sm:$0xff]
    %v76 = vld [vmem:[%s0 + $0x30] sm:$0xff]
    %v77 = vld [vmem:[%s0 + $0x38] sm:$0xff]
    %v78 = vld [vmem:[%s0 + $0x40] sm:$0xff]
    %v79 = vld [vmem:[%s0 + $0x48] sm:$0xff]
    %v80 = vld [vmem:[%s0 + $0x50] sm:$0xff]
    %v81 = vld [vmem:[%s0 + $0x58] sm:$0xff]
    %v82 = vld [vmem:[%s0 + $0x60] sm:$0xff]
    %v83 = vld [vmem:[%s0 + $0x68] sm:$0xff]
    %v84 = vld [vmem:[%s0 + $0x70] sm:$0xff]
    %v85 = vld [vmem:[%s0 + $0x78] sm:$0xff]
    %87 = vset.pattern.permute.xlu0 0
    %88 = vperm.xlu0 %87, %v37
    %v89 = vpop.permute.xlu0 %88
    %92 = vset.pattern.permute.xlu0 0
    %93 = vperm.xlu0 %92, %v38
    %v94 = vpop.permute.xlu0 %93
    %97 = vset.pattern.permute.xlu0 0
    %98 = vperm.xlu0 %97, %v39
    %v99 = vpop.permute.xlu0 %98
    %102 = vset.pattern.permute.xlu0 0
    %103 = vperm.xlu0 %102, %v40
    %v104 = vpop.permute.xlu0 %103
    %107 = vset.pattern.permute.xlu0 0
    %108 = vperm.xlu0 %107, %v41
    %v109 = vpop.permute.xlu0 %108
    %112 = vset.pattern.permute.xlu0 0
    %113 = vperm.xlu0 %112, %v42
    %v114 = vpop.permute.xlu0 %113
    %117 = vset.pattern.permute.xlu0 0
    %118 = vperm.xlu0 %117, %v43
    %v119 = vpop.permute.xlu0 %118
    %122 = vset.pattern.permute.xlu0 0
    %123 = vperm.xlu0 %122, %v44
    %v124 = vpop.permute.xlu0 %123
    %vm126 = vcmask 23552
    %v128 = vsel %vm126, %v29, 0
    %v131 = vsel %vm126, %v30, 0
    %v134 = vsel %vm126, %v31, 0
    %v137 = vsel %vm126, %v32, 0
    %v140 = vsel %vm126, %v33, 0
    %v143 = vsel %vm126, %v34, 0
    %v146 = vsel %vm126, %v35, 0
    %v149 = vsel %vm126, %v36, 0
    %v152 = vsel %vm126, %v70, 0
    %v155 = vsel %vm126, %v71, 0
    %v158 = vsel %vm126, %v72, 0
    %v161 = vsel %vm126, %v73, 0
    %v164 = vsel %vm126, %v74, 0
    %v167 = vsel %vm126, %v75, 0
    %v170 = vsel %vm126, %v76, 0
    %v173 = vsel %vm126, %v77, 0
    %v176 = vsel %vm126, %v78, 0
    %v179 = vsel %vm126, %v79, 0
    %v182 = vsel %vm126, %v80, 0
    %v185 = vsel %vm126, %v81, 0
    %v188 = vsel %vm126, %v82, 0
    %v191 = vsel %vm126, %v83, 0
    %v194 = vsel %vm126, %v84, 0
    %v197 = vsel %vm126, %v85, 0
    %199 = vmatprep.subr.mxu0 0.0
    %200 = vmatpush1.xpose.msra.mxu0 %v197
    %201 = vmatprep.subr.mxu0 0.0
    %202 = vmatpush1.xpose.msra.mxu0 %v194
    %203 = vmatprep.subr.mxu0 0.0
    %204 = vmatpush1.xpose.msra.mxu0 %v191
    %205 = vmatprep.subr.mxu0 0.0
    %206 = vmatpush1.xpose.msra.mxu0 %v188
    %207 = vmatprep.subr.mxu0 0.0
    %208 = vmatpush1.xpose.msra.mxu0 %v185
    %209 = vmatprep.subr.mxu0 0.0
    %210 = vmatpush1.xpose.msra.mxu0 %v182
    %211 = vmatprep.subr.mxu0 0.0
    %212 = vmatpush1.xpose.msra.mxu0 %v179
    %213 = vmatprep.subr.mxu0 0.0
    %214 = vmatpush1.xpose.msra.mxu0 %v176
    %215 = vmatprep.subr.mxu0 0.0
    %216 = vmatpush1.xpose.msra.mxu0 %v173
    %217 = vmatprep.subr.mxu0 0.0
    %218 = vmatpush1.xpose.msra.mxu0 %v170
    %219 = vmatprep.subr.mxu0 0.0
    %220 = vmatpush1.xpose.msra.mxu0 %v167
    %221 = vmatprep.subr.mxu0 0.0
    %222 = vmatpush1.xpose.msra.mxu0 %v164
    %223 = vmatprep.subr.mxu0 0.0
    %224 = vmatpush1.xpose.msra.mxu0 %v161
    %225 = vmatprep.subr.mxu0 0.0
    %226 = vmatpush1.xpose.msra.mxu0 %v158
    %227 = vmatprep.subr.mxu0 0.0
    %228 = vmatpush1.xpose.msra.mxu0 %v155
    %229 = vmatprep.subr.mxu0 0.0
    %230 = vmatpush1.xpose.msra.mxu0 %v152
    %231 = vmatprep.subr.mxu0 0.0
    %232 = vmatpush2.xpose.msra.mxu0 0.0
    %233 = vmatprep.subr.mxu0 0.0
    %234 = vmatpush2.xpose.msra.mxu0 0.0
    %235 = vmatprep.subr.mxu0 0.0
    %236 = vmatpush2.xpose.msra.mxu0 0.0
    %237 = vmatprep.subr.mxu0 0.0
    %238 = vmatpush2.xpose.msra.mxu0 0.0
    %239 = vmatprep.subr.mxu0 0.0
    %240 = vmatpush2.xpose.msra.mxu0 0.0
    %241 = vmatprep.subr.mxu0 0.0
    %242 = vmatpush2.xpose.msra.mxu0 0.0
    %243 = vmatprep.subr.mxu0 0.0
    %244 = vmatpush2.xpose.msra.mxu0 0.0
    %245 = vmatprep.subr.mxu0 0.0
    %246 = vmatpush2.xpose.msra.mxu0 0.0
    %247 = vmatprep.subr.mxu0 0.0
    %248 = vmatpush2.xpose.msra.mxu0 0.0
    %249 = vmatprep.subr.mxu0 0.0
    %250 = vmatpush2.xpose.msra.mxu0 0.0
    %251 = vmatprep.subr.mxu0 0.0
    %252 = vmatpush2.xpose.msra.mxu0 0.0
    %253 = vmatprep.subr.mxu0 0.0
    %254 = vmatpush2.xpose.msra.mxu0 0.0
    %255 = vmatprep.subr.mxu0 0.0
    %256 = vmatpush2.xpose.msra.mxu0 0.0
    %257 = vmatprep.subr.mxu0 0.0
    %258 = vmatpush2.xpose.msra.mxu0 0.0
    %259 = vmatprep.subr.mxu0 0.0
    %260 = vmatpush2.xpose.msra.mxu0 0.0
    %261 = vmatprep.subr.mxu0 0.0
    %262 = vmatpush2.xpose.msra.mxu0 0.0
    %263 = vmatprep.mubr.f32.mxu0 0.0
    %264 = vmatmul.mubr.f32.gmra.mxu0 %v128
    %v265 = vpop.f32.mrf.mxu0
    %v266 = vadd.f32 %v89, %v265
    %v267 = vpop.f32.mrf.mxu0
    %268 = vmatprep.mubr.f32.mxu0 0.0
    %269 = vmatmul.mubr.f32.gmra.mxu0 %v131
    %v270 = vpop.f32.mrf.mxu0
    %v271 = vadd.f32 %v94, %v270
    %v272 = vpop.f32.mrf.mxu0
    %273 = vmatprep.mubr.f32.mxu0 0.0
    %274 = vmatmul.mubr.f32.gmra.mxu0 %v134
    %v275 = vpop.f32.mrf.mxu0
    %v276 = vadd.f32 %v99, %v275
    %v277 = vpop.f32.mrf.mxu0
    %278 = vmatprep.mubr.f32.mxu0 0.0
    %279 = vmatmul.mubr.f32.gmra.mxu0 %v137
    %v280 = vpop.f32.mrf.mxu0
    %v281 = vadd.f32 %v104, %v280
    %v282 = vpop.f32.mrf.mxu0
    %283 = vmatprep.mubr.f32.mxu0 0.0
    %284 = vmatmul.mubr.f32.gmra.mxu0 %v140
    %v285 = vpop.f32.mrf.mxu0
    %v286 = vadd.f32 %v109, %v285
    %v287 = vpop.f32.mrf.mxu0
    %288 = vmatprep.mubr.f32.mxu0 0.0
    %289 = vmatmul.mubr.f32.gmra.mxu0 %v143
    %v290 = vpop.f32.mrf.mxu0
    %v291 = vadd.f32 %v114, %v290
    %v292 = vpop.f32.mrf.mxu0
    %293 = vmatprep.mubr.f32.mxu0 0.0
    %294 = vmatmul.mubr.f32.gmra.mxu0 %v146
    %v295 = vpop.f32.mrf.mxu0
    %v296 = vadd.f32 %v119, %v295
    %v297 = vpop.f32.mrf.mxu0
    %298 = vmatprep.mubr.f32.mxu0 0.0
    %299 = vmatmul.mubr.f32.gmra.mxu0 %v149
    %v300 = vpop.f32.mrf.mxu0
    %v301 = vadd.f32 %v124, %v300
    %v302 = vpop.f32.mrf.mxu0
    %303 = vdwg.mxu0
    %v304 = vmax.f32 %v266, 0.0
    %v305 = vmax.f32 %v271, 0.0
    %v306 = vmax.f32 %v276, 0.0
    %v307 = vmax.f32 %v281, 0.0
    %v308 = vmax.f32 %v286, 0.0
    %v309 = vmax.f32 %v291, 0.0
    %v310 = vmax.f32 %v296, 0.0
    %v311 = vmax.f32 %v301, 0.0
    %313 = vset.pattern.permute.xlu0 0
    %314 = vperm.xlu0 %313, %v53
    %v315 = vpop.permute.xlu0 %314
    %318 = vset.pattern.permute.xlu0 0
    %319 = vperm.xlu0 %318, %v54
    %v320 = vpop.permute.xlu0 %319
    %323 = vset.pattern.permute.xlu0 0
    %324 = vperm.xlu0 %323, %v55
    %v325 = vpop.permute.xlu0 %324
    %328 = vset.pattern.permute.xlu0 0
    %329 = vperm.xlu0 %328, %v56
    %v330 = vpop.permute.xlu0 %329
    %333 = vset.pattern.permute.xlu0 0
    %334 = vperm.xlu0 %333, %v57
    %v335 = vpop.permute.xlu0 %334
    %338 = vset.pattern.permute.xlu0 0
    %339 = vperm.xlu0 %338, %v58
    %v340 = vpop.permute.xlu0 %339
    %343 = vset.pattern.permute.xlu0 0
    %344 = vperm.xlu0 %343, %v59
    %v345 = vpop.permute.xlu0 %344
    %348 = vset.pattern.permute.xlu0 0
    %349 = vperm.xlu0 %348, %v60
    %v350 = vpop.permute.xlu0 %349
    %vm352 = vcmask 523264
    %v354 = vsel %vm352, %v45, 0
    %v357 = vsel %vm352, %v46, 0
    %v360 = vsel %vm352, %v47, 0
    %v363 = vsel %vm352, %v48, 0
    %v366 = vsel %vm352, %v49, 0
    %v369 = vsel %vm352, %v50, 0
    %v372 = vsel %vm352, %v51, 0
    %v375 = vsel %vm352, %v52, 0
    %377 = vmatprep.subr.mxu0 0.0
    %378 = vmatpush1.msra.mxu0 0.0
    %379 = vmatprep.subr.mxu0 0.0
    %380 = vmatpush1.msra.mxu0 0.0
    %381 = vmatprep.subr.mxu0 0.0
    %382 = vmatpush1.msra.mxu0 0.0
    %383 = vmatprep.subr.mxu0 0.0
    %384 = vmatpush1.msra.mxu0 0.0
    %385 = vmatprep.subr.mxu0 0.0
    %386 = vmatpush1.msra.mxu0 0.0
    %387 = vmatprep.subr.mxu0 0.0
    %388 = vmatpush1.msra.mxu0 0.0
    %389 = vmatprep.subr.mxu0 0.0
    %390 = vmatpush1.msra.mxu0 0.0
    %391 = vmatprep.subr.mxu0 0.0
    %392 = vmatpush1.msra.mxu0 0.0
    %393 = vmatprep.subr.mxu0 0.0
    %394 = vmatpush1.msra.mxu0 %v311
    %395 = vmatprep.subr.mxu0 0.0
    %396 = vmatpush1.msra.mxu0 %v310
    %397 = vmatprep.subr.mxu0 0.0
    %398 = vmatpush1.msra.mxu0 %v309
    %399 = vmatprep.subr.mxu0 0.0
    %400 = vmatpush1.msra.mxu0 %v308
    %401 = vmatprep.subr.mxu0 0.0
    %402 = vmatpush1.msra.mxu0 %v307
    %403 = vmatprep.subr.mxu0 0.0
    %404 = vmatpush1.msra.mxu0 %v306
    %405 = vmatprep.subr.mxu0 0.0
    %406 = vmatpush1.msra.mxu0 %v305
    %407 = vmatprep.subr.mxu0 0.0
    %408 = vmatpush1.msra.mxu0 %v304
    %409 = vmatprep.subr.mxu0 0.0
    %410 = vmatpush2.msra.mxu0 0.0
    %411 = vmatprep.subr.mxu0 0.0
    %412 = vmatpush2.msra.mxu0 0.0
    %413 = vmatprep.subr.mxu0 0.0
    %414 = vmatpush2.msra.mxu0 0.0
    %415 = vmatprep.subr.mxu0 0.0
    %416 = vmatpush2.msra.mxu0 0.0
    %417 = vmatprep.subr.mxu0 0.0
    %418 = vmatpush2.msra.mxu0 0.0
    %419 = vmatprep.subr.mxu0 0.0
    %420 = vmatpush2.msra.mxu0 0.0
    %421 = vmatprep.subr.mxu0 0.0
    %422 = vmatpush2.msra.mxu0 0.0
    %423 = vmatprep.subr.mxu0 0.0
    %424 = vmatpush2.msra.mxu0 0.0
    %425 = vmatprep.subr.mxu0 0.0
    %426 = vmatpush2.msra.mxu0 0.0
    %427 = vmatprep.subr.mxu0 0.0
    %428 = vmatpush2.msra.mxu0 0.0
    %429 = vmatprep.subr.mxu0 0.0
    %430 = vmatpush2.msra.mxu0 0.0
    %431 = vmatprep.subr.mxu0 0.0
    %432 = vmatpush2.msra.mxu0 0.0
    %433 = vmatprep.subr.mxu0 0.0
    %434 = vmatpush2.msra.mxu0 0.0
    %435 = vmatprep.subr.mxu0 0.0
    %436 = vmatpush2.msra.mxu0 0.0
    %437 = vmatprep.subr.mxu0 0.0
    %438 = vmatpush2.msra.mxu0 0.0
    %439 = vmatprep.subr.mxu0 0.0
    %440 = vmatpush2.msra.mxu0 0.0
    %441 = vmatprep.mubr.f32.mxu0 0.0
    %442 = vmatmul.mubr.f32.gmra.mxu0 %v354
    %v443 = vpop.f32.mrf.mxu0
    %v444 = vadd.f32 %v315, %v443
    %v445 = vpop.f32.mrf.mxu0
    %446 = vmatprep.mubr.f32.mxu0 0.0
    %447 = vmatmul.mubr.f32.gmra.mxu0 %v357
    %v448 = vpop.f32.mrf.mxu0
    %v449 = vadd.f32 %v320, %v448
    %v450 = vpop.f32.mrf.mxu0
    %451 = vmatprep.mubr.f32.mxu0 0.0
    %452 = vmatmul.mubr.f32.gmra.mxu0 %v360
    %v453 = vpop.f32.mrf.mxu0
    %v454 = vadd.f32 %v325, %v453
    %v455 = vpop.f32.mrf.mxu0
    %456 = vmatprep.mubr.f32.mxu0 0.0
    %457 = vmatmul.mubr.f32.gmra.mxu0 %v363
    %v458 = vpop.f32.mrf.mxu0
    %v459 = vadd.f32 %v330, %v458
    %v460 = vpop.f32.mrf.mxu0
    %461 = vmatprep.mubr.f32.mxu0 0.0
    %462 = vmatmul.mubr.f32.gmra.mxu0 %v366
    %v463 = vpop.f32.mrf.mxu0
    %v464 = vadd.f32 %v335, %v463
    %v465 = vpop.f32.mrf.mxu0
    %466 = vmatprep.mubr.f32.mxu0 0.0
    %467 = vmatmul.mubr.f32.gmra.mxu0 %v369
    %v468 = vpop.f32.mrf.mxu0
    %v469 = vadd.f32 %v340, %v468
    %v470 = vpop.f32.mrf.mxu0
    %471 = vmatprep.mubr.f32.mxu0 0.0
    %472 = vmatmul.mubr.f32.gmra.mxu0 %v372
    %v473 = vpop.f32.mrf.mxu0
    %v474 = vadd.f32 %v345, %v473
    %v475 = vpop.f32.mrf.mxu0
    %476 = vmatprep.mubr.f32.mxu0 0.0
    %477 = vmatmul.mubr.f32.gmra.mxu0 %v375
    %v478 = vpop.f32.mrf.mxu0
    %v479 = vadd.f32 %v350, %v478
    %v480 = vpop.f32.mrf.mxu0
    %481 = vdwg.mxu0
    %v482 = vmax.f32 %v444, 0.0
    %v483 = vmax.f32 %v449, 0.0
    %v484 = vmax.f32 %v454, 0.0
    %v485 = vmax.f32 %v459, 0.0
    %v486 = vmax.f32 %v464, 0.0
    %v487 = vmax.f32 %v469, 0.0
    %v488 = vmax.f32 %v474, 0.0
    %v489 = vmax.f32 %v479, 0.0
    %491 = vset.pattern.permute.xlu0 0
    %492 = vperm.xlu0 %491, %v61
    %v493 = vpop.permute.xlu0 %492
    %496 = vset.pattern.permute.xlu0 0
    %497 = vperm.xlu0 %496, %v62
    %v498 = vpop.permute.xlu0 %497
    %501 = vset.pattern.permute.xlu0 0
    %502 = vperm.xlu0 %501, %v63
    %v503 = vpop.permute.xlu0 %502
    %506 = vset.pattern.permute.xlu0 0
    %507 = vperm.xlu0 %506, %v64
    %v508 = vpop.permute.xlu0 %507
    %511 = vset.pattern.permute.xlu0 0
    %512 = vperm.xlu0 %511, %v65
    %v513 = vpop.permute.xlu0 %512
    %516 = vset.pattern.permute.xlu0 0
    %517 = vperm.xlu0 %516, %v66
    %v518 = vpop.permute.xlu0 %517
    %521 = vset.pattern.permute.xlu0 0
    %522 = vperm.xlu0 %521, %v67
    %v523 = vpop.permute.xlu0 %522
    %526 = vset.pattern.permute.xlu0 0
    %527 = vperm.xlu0 %526, %v68
    %v528 = vpop.permute.xlu0 %527
    %v530 = vmul.f32 %v493, %v482
    %v531 = vmul.f32 %v498, %v483
    %v532 = vmul.f32 %v503, %v484
    %v533 = vmul.f32 %v508, %v485
    %v534 = vmul.f32 %v513, %v486
    %v535 = vmul.f32 %v518, %v487
    %v536 = vmul.f32 %v523, %v488
    %v537 = vmul.f32 %v528, %v489
    %v538 = vadd.f32 %v530, %v531
    %v539 = vadd.f32 %v538, %v532
    %v540 = vadd.f32 %v539, %v533
    %v541 = vadd.f32 %v540, %v534
    %v542 = vadd.f32 %v541, %v535
    %v543 = vadd.f32 %v542, %v536
    %v544 = vadd.f32 %v543, %v537
    %v545 = vrot.slane %v544, 4
    %v546 = vadd.f32 %v544, %v545
    %v547 = vrot.slane %v546, 2
    %v548 = vadd.f32 %v546, %v547
    %v549 = vrot.slane %v548, 1
    %v550 = vadd.f32 %v548, %v549
    %552 = vset.pattern.permute.xlu0 0
    %553 = vperm.xlu0 %552, %v69
    %v554 = vpop.permute.xlu0 %553
    %v556 = vlaneseq
    %v557 = vshrl.u32 %v556, 7
    %v558 = vsub.s32 0, %v557
    %v559 = vrot.slane %v554, %v558
    %v560 = vadd.f32 %v550, %v559
    %561 = vst [vmem:[#allocation3] sm:$0x1] %v560
    // Predicated region
    $region30: #{tpu_custom_call.1} parent=1 // pred_check
      _
    $region31: #{tpu_custom_call.1} parent=1 // pred_check_branch
      %563 = sbr.rel (0) target = $region33
    $region32: #{tpu_custom_call.1} parent=1 // pred_region
      %s565 = ssub.s32 16, 16
      %566 = vsyncadd [#allocation4], %s565
      %s568 = sshll.u32 [#allocation3], 4
      %s569 = int_to_ptr.vmem [resolvable:$true] %s568
      %571 = dma.vmem_to_hbm [thread:$0]  %s569, 16, %s7, [#allocation4]
    $region33: #{tpu_custom_call.1} parent=1 // pred_fallthru
      _
    // Predicated region
    $region34: #{tpu_custom_call.1} parent=1 // pred_check
      _
    $region35: #{tpu_custom_call.1} parent=1 // pred_check_branch
      %573 = sbr.rel (0) target = $region37
    $region36: #{tpu_custom_call.1} parent=1 // pred_region
      %574 = dma.done [#allocation4], 16
    $region37: #{tpu_custom_call.1} parent=1 // pred_fallthru
      _
    %575 = vsyncpa [#allocation4], 1

</llo_original>
